<compile_context>
chip_gen: v6e
topology: v6e:2x2x1
jax: 0.10.0
libtpu: 0.0.40
codegen_flags: <defaults>
</compile_context>

<pallas_src>
import functools
import math

import jax
import jax.numpy as jnp
import numpy as np
from jax.experimental import pallas as pl
from jax.experimental.pallas import tpu as pltpu


_LANE = 128
_SUBLANE = 8
_SENTINEL = 1.0e9            # padded grid coordinate; exp underflows to 0
_SENTINEL_STD_MAX = 1.0e7    # exp(-0.5*SENTINEL^2/std^2)==0 needs std << 7.5e7
_REG_Z_ELEMS = 48 * 1024     # keep z within ~48 vregs (no spill vst/vld)
_TILE_BYTES_TARGET = 4 << 20  # upper bound on an f32 output tile
_MIN_TILES = 4               # >=2 tiles per TC on v7x; enables DMA/compute overlap


class DimensionalityError(Exception):
    def __str__(self):
        return "Dimensionality of the output must be 1D or 2D."


def _round_up(x, m):
    return (x + m - 1) // m * m


def _radial_kernel(scale_ref, coords_ref, grid_ref, out_ref, *, n_coords):
    """scale_ref: SMEM (1,) f32 = -0.5/std^2.
    coords_ref: (TB, C) f32;  grid_ref: (C, S_pad) f32;  out_ref: (TB, S_pad)."""
    neg_half_inv_var = scale_ref[0]

    # Squared distance between every query point and every grid point.
    diff = grid_ref[0:1, :] - coords_ref[:, 0:1]                  # (TB, S)
    d2 = diff * diff
    for c in range(1, n_coords):                                  # static, <= 2
        diff = grid_ref[c:c + 1, :] - coords_ref[:, c:c + 1]
        d2 = d2 + diff * diff

    e = neg_half_inv_var * d2                                     # <= 0 everywhere
    m = jnp.max(e, axis=-1, keepdims=True)                        # XLU row max (free slot);
    z = jnp.exp(e - m)                                            # robust exp; EUP
    denom = jnp.sum(z, axis=-1, keepdims=True)                    # (TB, 1)
    inv = pl.reciprocal(denom, approx=False)                      # exact: keeps 1e-6 tol
    out_ref[...] = (z * inv).astype(out_ref.dtype)                # lane-dense store


def _choose_batch_tile(b_pad, s_pad):
    """Batch tile (multiple of 8) capped so:
      (a) z stays within ~48 vregs (no spills stealing the store slot on v5e),
      (b) the f32 output tile stays <= ~4 MiB,
      (c) the batch grid has >= _MIN_TILES steps when b_pad allows it, so v7x's
          two TCs both get work and the writeback overlaps the next tile."""
    reg_rows = max(_SUBLANE, (_REG_Z_ELEMS // s_pad) // _SUBLANE * _SUBLANE)
    vmem_rows = max(_SUBLANE, (_TILE_BYTES_TARGET // (s_pad * 4)) // _SUBLANE * _SUBLANE)
    tb = min(reg_rows, vmem_rows, b_pad)
    if b_pad > _SUBLANE:
        split_rows = _round_up(pl.cdiv(b_pad, _MIN_TILES), _SUBLANE)
        tb = min(tb, max(_SUBLANE, split_rows))
    return int(max(_SUBLANE, tb))


def _vmem_limit_bytes(tile_bytes, grid_bytes):
    """Working set ~= 2x out tile (double buffer) + 2x grid block + ~3 tile-sized
    temporaries (diff/d2/z); capped at 3/4 of the chip's physical VMEM."""
    try:
        cap = int(pltpu.get_tpu_info().vmem_capacity_bytes)
    except Exception:
        cap = 64 << 20  # conservative: v7x per-TensorCore VMEM
    want = 6 * tile_bytes + 4 * grid_bytes + (2 << 20)
    return int(min(max(16 << 20, want), (cap * 3) // 4))


def _radial_pallas(coords, grid_coords, std, out_dtype):
    """coords: (B, C) f32;  grid_coords: (C, S_pad) f32 (lane-padded).
    Returns the PADDED (b_pad, S_pad) output; the caller slices (at most once)."""
    B, C = coords.shape
    C2, S_pad = grid_coords.shape
    assert C == C2 and S_pad % _LANE == 0

    b_pad8 = _round_up(B, _SUBLANE)
    tb = _choose_batch_tile(b_pad8, S_pad)
    b_pad = _round_up(b_pad8, tb)
    if b_pad != B:
        # Padded query rows compute a valid (discarded) Gaussian centered at 0.
        coords = jnp.pad(coords, ((0, b_pad - B), (0, 0)))

    scale = (-0.5 / (jnp.asarray(std, jnp.float32) ** 2)).reshape((1,))

    n_tiles = b_pad // tb
    tile_bytes = tb * S_pad * 4
    grid_bytes = C * S_pad * 4
    out_bytes = int(jnp.dtype(out_dtype).itemsize)
    cost = pl.CostEstimate(
        flops=int((3 * C + 5) * b_pad * S_pad),
        transcendentals=int(b_pad * S_pad),
        bytes_accessed=int(b_pad * S_pad * out_bytes + 4 * (b_pad * C + C * S_pad)),
    )

    return pl.pallas_call(
        functools.partial(_radial_kernel, n_coords=C),
        out_shape=jax.ShapeDtypeStruct((b_pad, S_pad), out_dtype),
        grid=(n_tiles,),
        in_specs=[
            pl.BlockSpec(memory_space=pltpu.SMEM),             # -0.5/std^2 scalar
            pl.BlockSpec((tb, C), lambda i: (i, 0)),           # query coords (tiled)
            pl.BlockSpec((C, S_pad), lambda i: (0, 0)),        # grid coords (resident)
        ],
        out_specs=pl.BlockSpec((tb, S_pad), lambda i: (i, 0)),
        compiler_params=pltpu.CompilerParams(
            dimension_semantics=("parallel",),                 # v7x: shard B-tiles on 2 TCs
            vmem_limit_bytes=_vmem_limit_bytes(tile_bytes, grid_bytes),
        ),
        cost_estimate=cost,
    )(scale, coords, grid_coords)


@functools.partial(jax.jit, static_argnames=("out_rows", "out_cols", "out_dtype"))
def _radial_call(coords, grid_coords, std, out_rows, out_cols, out_dtype):
    out = _radial_pallas(coords, grid_coords, std, out_dtype)
    # Single combined slice (vs. two before), inside the same jit as the kernel;
    # skipped entirely when the padded layout already matches.
    if out.shape[0] != out_rows or out.shape[1] != out_cols:
        out = out[:out_rows, :out_cols]
    return out


class RadialBasis:
    """JAX/Pallas port of the PyTorch RadialBasis module (forward pass)."""

    def __init__(self, size, dims, out_dtype=jnp.float32):
        self.dims = dims
        self.size = size
        self.out_dtype = out_dtype  # f32 = torch parity; bf16 halves HBM writes
        if dims == 1:
            self.side = size
            grid = jnp.arange(size, dtype=jnp.float32).reshape(1, size)       # (1, S)
        elif dims == 2:
            side = int(math.sqrt(size))
            if side ** 2 != size:
                raise ValueError("Dimensions must be equal")
            self.side = side
            t = jnp.arange(side)
            rr, cc = jnp.meshgrid(t, t, indexing="ij")
            grid = jnp.stack([rr.reshape(-1), cc.reshape(-1)]).astype(jnp.float32)  # (2, S)
        else:
            raise DimensionalityError()
        # Lane-pad S to a multiple of 128 with far-away sentinel points whose
        # Gaussians are exactly 0 (normalization preserved, stores unmasked).
        s_pad = _round_up(grid.shape[1], _LANE)
        if s_pad != grid.shape[1]:
            grid = jnp.pad(grid, ((0, 0), (0, s_pad - grid.shape[1])),
                           constant_values=_SENTINEL)
        self.size_padded = s_pad
        self.grid = grid                                                      # (C, S_pad)

    def __call__(self, index, std, as_point=False):
        # Sentinel underflow bound (only checkable for concrete std).
        try:
            if float(std) > _SENTINEL_STD_MAX:
                raise ValueError(
                    f"std={float(std)} too large for sentinel padding "
                    f"(must be < {_SENTINEL_STD_MAX:g})")
        except (TypeError, jax.errors.TracerArrayConversionError,
                jax.errors.ConcretizationTypeError):
            pass

        if self.dims == 1:
            coords = index.astype(jnp.float32).reshape(-1, 1)                 # (B, 1)
        else:
            if as_point:
                coords = index.astype(jnp.float32).reshape(-1, 2)             # (B, 2)
            else:
                row = index // self.side
                col = index % self.side
                coords = jnp.stack([row, col], axis=-1).astype(jnp.float32)   # (B, 2)
        return _radial_call(coords, self.grid, std,
                            coords.shape[0], self.size, self.out_dtype)


def _reference(coords, grid_coords, std):
    # Pure-JAX reference of the same math (unpadded grid).
    d2 = jnp.sum((grid_coords[None, :, :] - coords[:, :, None]) ** 2, axis=1)
    z = jnp.exp(-0.5 * (std ** -2) * d2)
    return z / jnp.sum(z, axis=-1, keepdims=True)


if __name__ == "__main__":
    key = jax.random.PRNGKey(0)
    k1, k2, k3, k4, k5 = jax.random.split(key, 5)
    std = 2.0
    batch = 8

    # ---- 2D, lane-aligned size: 256 grid points (16 x 16), batch of 8 -> no slice at all
    rb2 = RadialBasis(256, dims=2)
    idx2 = jax.random.randint(k1, (batch,), 0, 256, dtype=jnp.int32)
    out2 = jax.block_until_ready(rb2(idx2, std))
    row, col = idx2 // rb2.side, idx2 % rb2.side
    coords2 = jnp.stack([row, col], axis=-1).astype(jnp.float32)
    ref2 = _reference(coords2, rb2.grid[:, :rb2.size], std)
    np.testing.assert_allclose(np.asarray(out2), np.asarray(ref2), rtol=1e-5, atol=1e-6)

    # ---- 2D, non-lane-aligned size: 225 grid points (15 x 15) -> exercises S padding
    rb2b = RadialBasis(225, dims=2)
    idx2b = jax.random.randint(k2, (batch,), 0, 225, dtype=jnp.int32)
    out2b = jax.block_until_ready(rb2b(idx2b, std))
    row, col = idx2b // rb2b.side, idx2b % rb2b.side
    coords2b = jnp.stack([row, col], axis=-1).astype(jnp.float32)
    ref2b = _reference(coords2b, rb2b.grid[:, :rb2b.size], std)
    np.testing.assert_allclose(np.asarray(out2b), np.asarray(ref2b), rtol=1e-5, atol=1e-6)

    # ---- 1D, non-lane-aligned size: 100 grid points
    rb1 = RadialBasis(100, dims=1)
    idx1 = jax.random.randint(k3, (batch,), 0, 100, dtype=jnp.int32)
    out1 = jax.block_until_ready(rb1(idx1, std))
    coords1 = idx1.astype(jnp.float32).reshape(-1, 1)
    ref1 = _reference(coords1, rb1.grid[:, :rb1.size], std)
    np.testing.assert_allclose(np.asarray(out1), np.asarray(ref1), rtol=1e-5, atol=1e-6)

    # ---- 2D, larger batch (40) -> exercises multi-tile grid + batch padding
    idx2c = jax.random.randint(k4, (40,), 0, 256, dtype=jnp.int32)
    out2c = jax.block_until_ready(rb2(idx2c, std))
    row, col = idx2c // rb2.side, idx2c % rb2.side
    coords2c = jnp.stack([row, col], axis=-1).astype(jnp.float32)
    ref2c = _reference(coords2c, rb2.grid[:, :rb2.size], std)
    np.testing.assert_allclose(np.asarray(out2c), np.asarray(ref2c), rtol=1e-5, atol=1e-6)

    # ---- 2D, as_point path with fractional coordinates (max-shift robustness)
    pts = jax.random.uniform(k5, (batch, 2), minval=0.0, maxval=15.0)
    out2d = jax.block_until_ready(rb2(pts, 1.0, as_point=True))
    ref2d = _reference(pts, rb2.grid[:, :rb2.size], 1.0)
    np.testing.assert_allclose(np.asarray(out2d), np.asarray(ref2d), rtol=1e-5, atol=1e-6)

    assert out2.shape == (batch, 256)
    assert out2b.shape == (batch, 225)
    assert out1.shape == (batch, 100)
    assert out2c.shape == (40, 256)
    assert out2d.shape == (batch, 256)
    print("KERNEL_OK")
</pallas_src>

<mosaic_0001>
module attributes {stable_mosaic.version = 11 : i64} {
  func.func @_radial_kernel(%arg0: i32, %arg1: memref<1xf32, #tpu.memory_space<smem>>, %arg2: memref<8x2xf32, #tpu.memory_space<vmem>>, %arg3: memref<2x256xf32, #tpu.memory_space<vmem>>, %arg4: memref<8x256xf32, #tpu.memory_space<vmem>>) attributes {dimension_semantics = [#tpu.dimension_semantics<parallel>], iteration_bounds = array<i64: 1>, scalar_prefetch = 0 : i64, scratch_operands = 0 : i64, tpu.core_type = #tpu.core_type<tc>, window_params = [{transform_indices = @transform_0, window_bounds = array<i64: 1>}, {transform_indices = @transform_1, window_bounds = array<i64: 8, 2>}, {pipeline_mode = #tpu.pipeline_mode<synchronous>, transform_indices = @transform_2, window_bounds = array<i64: 2, 256>}, {transform_indices = @transform_3, window_bounds = array<i64: 8, 256>}]} {
    %c0 = arith.constant 0 : index
    %0 = memref.load %arg1[%c0] : memref<1xf32, #tpu.memory_space<smem>>
    %c0_0 = arith.constant 0 : index
    %c0_1 = arith.constant 0 : index
    %1 = vector.load %arg3[%c0_0, %c0_1] : memref<2x256xf32, #tpu.memory_space<vmem>>, vector<1x256xf32>
    %c0_2 = arith.constant 0 : index
    %c0_3 = arith.constant 0 : index
    %2 = vector.load %arg2[%c0_2, %c0_3] : memref<8x2xf32, #tpu.memory_space<vmem>>, vector<8x1xf32>
    %3 = vector.broadcast %1 : vector<1x256xf32> to vector<8x256xf32>
    %4 = vector.broadcast %2 : vector<8x1xf32> to vector<8x256xf32>
    %5 = arith.subf %3, %4 : vector<8x256xf32>
    %6 = arith.mulf %5, %5 : vector<8x256xf32>
    %c1 = arith.constant 1 : index
    %c0_4 = arith.constant 0 : index
    %7 = vector.load %arg3[%c1, %c0_4] : memref<2x256xf32, #tpu.memory_space<vmem>>, vector<1x256xf32>
    %c0_5 = arith.constant 0 : index
    %c1_6 = arith.constant 1 : index
    %8 = vector.load %arg2[%c0_5, %c1_6] : memref<8x2xf32, #tpu.memory_space<vmem>>, vector<8x1xf32>
    %9 = vector.broadcast %7 : vector<1x256xf32> to vector<8x256xf32>
    %10 = vector.broadcast %8 : vector<8x1xf32> to vector<8x256xf32>
    %11 = arith.subf %9, %10 : vector<8x256xf32>
    %12 = arith.mulf %11, %11 : vector<8x256xf32>
    %13 = arith.addf %6, %12 : vector<8x256xf32>
    %14 = vector.broadcast %0 : f32 to vector<8x256xf32>
    %15 = arith.mulf %14, %13 : vector<8x256xf32>
    %cst = arith.constant dense<0xFF800000> : vector<8xf32>
    %16 = vector.multi_reduction <maximumf>, %15, %cst [1] : vector<8x256xf32> to vector<8xf32>
    %17 = vector.shape_cast %16 : vector<8xf32> to vector<8x1xf32>
    %18 = vector.broadcast %17 : vector<8x1xf32> to vector<8x256xf32>
    %19 = arith.subf %15, %18 : vector<8x256xf32>
    %20 = math.exp %19 : vector<8x256xf32>
    %cst_7 = arith.constant dense<0.000000e+00> : vector<8xf32>
    %21 = vector.multi_reduction <add>, %20, %cst_7 [1] : vector<8x256xf32> to vector<8xf32>
    %22 = vector.shape_cast %21 : vector<8xf32> to vector<8x1xf32>
    %23 = tpu.reciprocal %22 : vector<8x1xf32> -> vector<8x1xf32>
    %24 = vector.broadcast %23 : vector<8x1xf32> to vector<8x256xf32>
    %25 = arith.mulf %20, %24 : vector<8x256xf32>
    %c0_8 = arith.constant 0 : index
    %c0_9 = arith.constant 0 : index
    %26 = vector.load %arg4[%c0_8, %c0_9] : memref<8x256xf32, #tpu.memory_space<vmem>>, vector<8x256xf32>
    tpu.vector_store %arg4[%c0_8, %c0_9], %25 {strides = array<i32>} : memref<8x256xf32, #tpu.memory_space<vmem>>, vector<8x256xf32>,
    return
  }
  func.func @transform_0(%arg0: i32) -> i32 {
    %c0_i32 = arith.constant 0 : i32
    %c0_i32_0 = arith.constant 0 : i32
    return %c0_i32 : i32
  }
  func.func @transform_1(%arg0: i32) -> (i32, i32) {
    %c0_i32 = arith.constant 0 : i32
    %c0_i32_0 = arith.constant 0 : i32
    return %arg0, %c0_i32 : i32, i32
  }
  func.func @transform_2(%arg0: i32) -> (i32, i32) {
    %c0_i32 = arith.constant 0 : i32
    %c0_i32_0 = arith.constant 0 : i32
    %c0_i32_1 = arith.constant 0 : i32
    return %c0_i32, %c0_i32_0 : i32, i32
  }
  func.func @transform_3(%arg0: i32) -> (i32, i32) {
    %c0_i32 = arith.constant 0 : i32
    %c0_i32_0 = arith.constant 0 : i32
    return %arg0, %c0_i32 : i32, i32
  }
}

</mosaic_0001>

<llo_original>
// kernel: _radial_call.1
$region0: #{_radial_call.1}
  #allocation0 [shape = 'u32[]', space=smem, size = 0x4, offset = 0x4, fixed_abs, tag = 'smem constant byte address 0x4 - core index']
  #allocation1 [shape = 'u32[144,128]{1,0:T(1,128)}', space=vmem, size = 0x12000, scoped, tag = 'internal scratch']
  #allocation2 [shape = 'f32[1]{0:T(128)S(6)}', space=smem, size = 0x200, scoped, tag = 'scoped memory for _radial_call.1']
  %s0 = inlined_call_operand.<no memory space> [shape: f32[1], index: 0, kind: input, shape index: {}]
  %s1 = inlined_call_operand.vmem [shape: f32[8,2], index: 1, kind: input, shape index: {}]
  %s2 = inlined_call_operand.vmem [shape: f32[2,256], index: 2, kind: input, shape index: {}]
  %s3 = inlined_call_operand.hbm [shape: f32[8,256], index: 3, kind: output, shape index: {}]
  %s4 = sld [smem:[#allocation0]]
  $region22: #{_radial_call.1} parent=0
    _
  %s6 = ssub.s32 1, %s4
  %s7 = scalar_select 0, %s6, %s4
  %8 = sst [smem:[#allocation2]] %s0
  $region1: #{_radial_call.1} parent=0
    #allocation3 [shape = 'u8[8192]{0}', space=vmem, size = 0x2000, scoped, tag = 'output window, operand 0, single buffered']
    #allocation4 [shape = 's32[1]{0}', space=sflag, size = 0x4, scoped, tag = 'scoped memory for _radial_call.1']
    %9 = vsyncpa [#allocation4], 0
    // Predicated region
    $region2: #{_radial_call.1} parent=1 // pred_check
      _
    $region3: #{_radial_call.1} parent=1 // pred_check_branch
      %11 = sbr.rel (0) target = $region5
    $region4: #{_radial_call.1} parent=1 // pred_region
      _
    $region5: #{_radial_call.1} parent=1 // pred_fallthru
      _
    // Predicated region
    $region6: #{_radial_call.1} parent=1 // pred_check
      _
    $region7: #{_radial_call.1} parent=1 // pred_check_branch
      %13 = sbr.rel (0) target = $region9
    $region8: #{_radial_call.1} parent=1 // pred_region
      _
    $region9: #{_radial_call.1} parent=1 // pred_fallthru
      _
    // Predicated region
    $region10: #{_radial_call.1} parent=1 // pred_check
      _
    $region11: #{_radial_call.1} parent=1 // pred_check_branch
      %15 = sbr.rel (0) target = $region13
    $region12: #{_radial_call.1} parent=1 // pred_region
      _
    $region13: #{_radial_call.1} parent=1 // pred_fallthru
      _
    %s16 = sld [smem:[#allocation2]]
    %v17 = vld [vmem:[%s2] ss:$2 sm:$0x3]
    %v18 = vld [vmem:[%s1] sm:$0xff]
    %v20 = vlaneseq
    %v21 = vshrl.u32 %v20, 7
    %v22 = vsub.s32 0, %v21
    %v23 = vrot.slane %v17, %v22
    %v24 = vlaneseq
    %v25 = vshrl.u32 %v24, 7
    %v26 = vsub.s32 1, %v25
    %v27 = vrot.slane %v17, %v26
    %31 = vset.pattern.permute.xlu0 0
    %32 = vperm.xlu0 %31, %v18
    %v33 = vpop.permute.xlu0 %32
    %v35 = vsub.f32 %v23, %v33
    %v36 = vsub.f32 %v27, %v33
    %v37 = vmul.f32 %v35, %v35
    %v38 = vmul.f32 %v36, %v36
    %s39 = scalar_lea.vmem %s2, 1
    %v40 = vld [vmem:[%s39] ss:$2 sm:$0x3]
    %v42 = vlaneseq
    %v43 = vshrl.u32 %v42, 7
    %v44 = vsub.s32 0, %v43
    %v45 = vrot.slane %v40, %v44
    %v46 = vlaneseq
    %v47 = vshrl.u32 %v46, 7
    %v48 = vsub.s32 1, %v47
    %v49 = vrot.slane %v40, %v48
    %52 = vset.pattern.permute.xlu0 1
    %53 = vperm.xlu0 %52, %v18
    %v54 = vpop.permute.xlu0 %53
    %v56 = vsub.f32 %v45, %v54
    %v57 = vsub.f32 %v49, %v54
    %v58 = vmul.f32 %v56, %v56
    %v59 = vmul.f32 %v57, %v57
    %v60 = vadd.f32 %v37, %v58
    %v61 = vadd.f32 %v38, %v59
    %v62 = vstv %s16
    %v63 = vmul.f32 %v62, %v60
    %v64 = vmul.f32 %v62, %v61
    %v65 = vmax.f32 %v63, %v64
    %66 = vmax.xlane.f32.xlu0 %v65
    %v67 = vpop.xlane.xlu0 %66
    %v68 = vsub.f32 %v63, %v67
    %v69 = vsub.f32 %v64, %v67
    %v70 = vmul.f32 %v68, 1.442695
    %v71 = vpow.pop %v70
    %v72 = vmul.f32 %v69, 1.442695
    %v73 = vpow.pop %v72
    %v74 = vadd.f32 %v71, %v73
    %75 = vadd.xlane.f32.xlu0 %v74
    %v76 = vpop.xlane.xlu0 %75
    %v77 = vrcp.pop %v76
    %v78 = vmul.f32 %v71, %v77
    %v79 = vmul.f32 %v73, %v77
    %80 = vst [vmem:[#allocation3] sm:$0xff] %v78
    %81 = vst [vmem:[#allocation3 + $0x8] sm:$0xff] %v79
    // Predicated region
    $region14: #{_radial_call.1} parent=1 // pred_check
      _
    $region15: #{_radial_call.1} parent=1 // pred_check_branch
      %83 = sbr.rel (0) target = $region17
    $region16: #{_radial_call.1} parent=1 // pred_region
      %s85 = ssub.s32 256, 256
      %86 = vsyncadd [#allocation4], %s85
      %s88 = sshll.u32 [#allocation3], 4
      %s89 = int_to_ptr.vmem [resolvable:$true] %s88
      %91 = dma.vmem_to_hbm [thread:$0]  %s89, 256, %s3, [#allocation4]
    $region17: #{_radial_call.1} parent=1 // pred_fallthru
      _
    // Predicated region
    $region18: #{_radial_call.1} parent=1 // pred_check
      _
    $region19: #{_radial_call.1} parent=1 // pred_check_branch
      %93 = sbr.rel (0) target = $region21
    $region20: #{_radial_call.1} parent=1 // pred_region
      %94 = dma.done [#allocation4], 256
    $region21: #{_radial_call.1} parent=1 // pred_fallthru
      _
    %95 = vsyncpa [#allocation4], 1

</llo_original>
